<compile_context>
chip_gen: v6e
topology: v6e:2x2x1
jax: 0.10.0
libtpu: 0.0.40
codegen_flags: <defaults>
</compile_context>

<pallas_src>
import jax
import jax.numpy as jnp
from jax.experimental import pallas as pl
from jax.experimental.pallas import tpu as pltpu


def _filter_kernel(z_ref, dims_ref, o_ref):
    z = z_ref[...].astype(jnp.float32)               # [tb, Dp], f32 math in VMEM
    num_dims = dims_ref.shape[0]                     # static K -> unrolled loop
    eps2 = jnp.float32(1e-24)                        # (1e-12)^2, clamp on ||z||^2
    for k in range(num_dims):
        d = dims_ref[pl.ds(k, 1), :].astype(jnp.float32)          # [1, Dp] row (sublane bcast)
        proj = jnp.sum(z * d, axis=1, keepdims=True)              # [tb, 1] == z @ d^T
        z = z - d * proj                                          # remove component along d
        sumsq = jnp.sum(z * z, axis=1, keepdims=True)             # [tb, 1]
        z = z * jax.lax.rsqrt(jnp.maximum(sumsq, eps2))           # F.normalize(z, dim=1)
    o_ref[...] = z.astype(o_ref.dtype)


def _round_up(x, m):
    return ((x + m - 1) // m) * m


def filter_forward(z, dims, *, tb=None, alias_input=False):
    """Apply the Filter module: sequential projection-removal + L2 normalize.

    z:    [B, D] activations (any float dtype; math is done in f32)
    dims: [K, D] stacked unit directions (PyTorch keeps a list of 1-D tensors)
    """
    B, D = z.shape
    K, D2 = dims.shape
    assert D == D2, "direction dimensionality must match feature dim"
    if K == 0:                        # empty self.dims -> identity
        return z

    out_dtype = z.dtype
    Dp = _round_up(D, 128)            # lane-dense feature dim

    if tb is None:
        # Target ~2 MiB per in/out block: big enough to hit ~85% of HBM
        # roofline, small enough that double-buffered in+out blocks fit the
        # smallest scoped-VMEM default (v5e 16 MiB, v7x 32 MiB of 64 MiB).
        row_bytes = Dp * jnp.dtype(out_dtype).itemsize
        tb = (2 * 1024 * 1024) // max(row_bytes, 1)
        tb = max(8, min(512, (tb // 8) * 8))
    tb = _round_up(min(tb, _round_up(B, 8)), 8)

    Bp = _round_up(B, tb)

    zp = z
    if Bp != B or Dp != D:
        zp = jnp.zeros((Bp, Dp), out_dtype).at[:B, :D].set(z)
    dimsp = dims
    if Dp != D:
        dimsp = jnp.zeros((K, Dp), dims.dtype).at[:, :D].set(dims)

    io_alias = {0: 0} if (alias_input and zp.shape == (Bp, Dp)) else {}

    grid = (Bp // tb,)
    out = pl.pallas_call(
        _filter_kernel,
        out_shape=jax.ShapeDtypeStruct((Bp, Dp), out_dtype),
        grid_spec=pltpu.PrefetchScalarGridSpec(
            num_scalar_prefetch=0,
            grid=grid,
            in_specs=[
                pl.BlockSpec((tb, Dp), lambda i: (i, 0)),   # batch-tiled z
                pl.BlockSpec((K, Dp), lambda i: (0, 0)),    # directions, resident per tile
            ],
            out_specs=pl.BlockSpec((tb, Dp), lambda i: (i, 0)),
        ),
        compiler_params=pltpu.CompilerParams(
            dimension_semantics=("parallel",)),
        input_output_aliases=io_alias,
    )(zp, dimsp)

    if Bp != B or Dp != D:
        out = out[:B, :D]
    return out


def _reference(z, dims):
    # Pure-JAX mirror of the PyTorch forward (sqrt + divide, eps on norm).
    z = z.astype(jnp.float32)
    for k in range(dims.shape[0]):
        d = dims[k].astype(jnp.float32)
        z = z - d[None, :] * (z @ d[:, None])
        n = jnp.sqrt(jnp.sum(z * z, axis=1, keepdims=True))
        z = z / jnp.maximum(n, 1e-12)
    return z


if __name__ == "__main__":
    key = jax.random.PRNGKey(0)
    B, D, K = 8, 32, 3                      # small synthetic shapes: batch=8, hidden=32, 3 filtered dims

    kz, kd = jax.random.split(key)
    z = jax.random.normal(kz, (B, D), dtype=jnp.float32)

    # Deterministic synthetic "principle directions" (SVD right-singular vectors
    # are unit-norm, so normalized random vectors stand in for them).
    raw = jax.random.normal(kd, (K, D), dtype=jnp.float32)
    dims = raw / jnp.linalg.norm(raw, axis=1, keepdims=True)

    out = filter_forward(z, dims)
    out = jax.block_until_ready(out)

    ref = _reference(z, dims)
    assert out.shape == (B, D)
    assert jnp.allclose(out, ref, atol=1e-4, rtol=1e-4), "mismatch vs pure-JAX reference"

    print("KERNEL_OK")
</pallas_src>

<mosaic_0001>
module attributes {stable_mosaic.version = 11 : i64} {
  func.func @_filter_kernel(%arg0: i32, %arg1: memref<8x128xf32, #tpu.memory_space<vmem>>, %arg2: memref<3x128xf32, #tpu.memory_space<vmem>>, %arg3: memref<8x128xf32, #tpu.memory_space<vmem>>) attributes {dimension_semantics = [#tpu.dimension_semantics<parallel>], iteration_bounds = array<i64: 1>, scalar_prefetch = 0 : i64, scratch_operands = 0 : i64, tpu.core_type = #tpu.core_type<tc>, window_params = [{transform_indices = @transform_0, window_bounds = array<i64: 8, 128>}, {pipeline_mode = #tpu.pipeline_mode<synchronous>, transform_indices = @transform_1, window_bounds = array<i64: 3, 128>}, {transform_indices = @transform_2, window_bounds = array<i64: 8, 128>}]} {
    %c0 = arith.constant 0 : index
    %c0_0 = arith.constant 0 : index
    %0 = vector.load %arg1[%c0, %c0_0] : memref<8x128xf32, #tpu.memory_space<vmem>>, vector<8x128xf32>
    %c0_1 = arith.constant 0 : index
    %c0_2 = arith.constant 0 : index
    %1 = vector.load %arg2[%c0_1, %c0_2] : memref<3x128xf32, #tpu.memory_space<vmem>>, vector<1x128xf32>
    %2 = vector.broadcast %1 : vector<1x128xf32> to vector<8x128xf32>
    %3 = arith.mulf %0, %2 : vector<8x128xf32>
    %cst = arith.constant dense<0.000000e+00> : vector<8xf32>
    %4 = vector.multi_reduction <add>, %3, %cst [1] : vector<8x128xf32> to vector<8xf32>
    %5 = vector.shape_cast %4 : vector<8xf32> to vector<8x1xf32>
    %6 = vector.broadcast %1 : vector<1x128xf32> to vector<8x128xf32>
    %7 = vector.broadcast %5 : vector<8x1xf32> to vector<8x128xf32>
    %8 = arith.mulf %6, %7 : vector<8x128xf32>
    %9 = arith.subf %0, %8 : vector<8x128xf32>
    %10 = arith.mulf %9, %9 : vector<8x128xf32>
    %cst_3 = arith.constant dense<0.000000e+00> : vector<8xf32>
    %11 = vector.multi_reduction <add>, %10, %cst_3 [1] : vector<8x128xf32> to vector<8xf32>
    %12 = vector.shape_cast %11 : vector<8xf32> to vector<8x1xf32>
    %cst_4 = arith.constant 1.000000e-24 : f32
    %13 = vector.broadcast %cst_4 : f32 to vector<8x1xf32>
    %14 = arith.maximumf %12, %13 : vector<8x1xf32>
    %15 = math.rsqrt %14 : vector<8x1xf32>
    %16 = vector.broadcast %15 : vector<8x1xf32> to vector<8x128xf32>
    %17 = arith.mulf %9, %16 : vector<8x128xf32>
    %c1 = arith.constant 1 : index
    %c0_5 = arith.constant 0 : index
    %18 = vector.load %arg2[%c1, %c0_5] : memref<3x128xf32, #tpu.memory_space<vmem>>, vector<1x128xf32>
    %19 = vector.broadcast %18 : vector<1x128xf32> to vector<8x128xf32>
    %20 = arith.mulf %17, %19 : vector<8x128xf32>
    %cst_6 = arith.constant dense<0.000000e+00> : vector<8xf32>
    %21 = vector.multi_reduction <add>, %20, %cst_6 [1] : vector<8x128xf32> to vector<8xf32>
    %22 = vector.shape_cast %21 : vector<8xf32> to vector<8x1xf32>
    %23 = vector.broadcast %18 : vector<1x128xf32> to vector<8x128xf32>
    %24 = vector.broadcast %22 : vector<8x1xf32> to vector<8x128xf32>
    %25 = arith.mulf %23, %24 : vector<8x128xf32>
    %26 = arith.subf %17, %25 : vector<8x128xf32>
    %27 = arith.mulf %26, %26 : vector<8x128xf32>
    %cst_7 = arith.constant dense<0.000000e+00> : vector<8xf32>
    %28 = vector.multi_reduction <add>, %27, %cst_7 [1] : vector<8x128xf32> to vector<8xf32>
    %29 = vector.shape_cast %28 : vector<8xf32> to vector<8x1xf32>
    %cst_8 = arith.constant 1.000000e-24 : f32
    %30 = vector.broadcast %cst_8 : f32 to vector<8x1xf32>
    %31 = arith.maximumf %29, %30 : vector<8x1xf32>
    %32 = math.rsqrt %31 : vector<8x1xf32>
    %33 = vector.broadcast %32 : vector<8x1xf32> to vector<8x128xf32>
    %34 = arith.mulf %26, %33 : vector<8x128xf32>
    %c2 = arith.constant 2 : index
    %c0_9 = arith.constant 0 : index
    %35 = vector.load %arg2[%c2, %c0_9] : memref<3x128xf32, #tpu.memory_space<vmem>>, vector<1x128xf32>
    %36 = vector.broadcast %35 : vector<1x128xf32> to vector<8x128xf32>
    %37 = arith.mulf %34, %36 : vector<8x128xf32>
    %cst_10 = arith.constant dense<0.000000e+00> : vector<8xf32>
    %38 = vector.multi_reduction <add>, %37, %cst_10 [1] : vector<8x128xf32> to vector<8xf32>
    %39 = vector.shape_cast %38 : vector<8xf32> to vector<8x1xf32>
    %40 = vector.broadcast %35 : vector<1x128xf32> to vector<8x128xf32>
    %41 = vector.broadcast %39 : vector<8x1xf32> to vector<8x128xf32>
    %42 = arith.mulf %40, %41 : vector<8x128xf32>
    %43 = arith.subf %34, %42 : vector<8x128xf32>
    %44 = arith.mulf %43, %43 : vector<8x128xf32>
    %cst_11 = arith.constant dense<0.000000e+00> : vector<8xf32>
    %45 = vector.multi_reduction <add>, %44, %cst_11 [1] : vector<8x128xf32> to vector<8xf32>
    %46 = vector.shape_cast %45 : vector<8xf32> to vector<8x1xf32>
    %cst_12 = arith.constant 1.000000e-24 : f32
    %47 = vector.broadcast %cst_12 : f32 to vector<8x1xf32>
    %48 = arith.maximumf %46, %47 : vector<8x1xf32>
    %49 = math.rsqrt %48 : vector<8x1xf32>
    %50 = vector.broadcast %49 : vector<8x1xf32> to vector<8x128xf32>
    %51 = arith.mulf %43, %50 : vector<8x128xf32>
    %c0_13 = arith.constant 0 : index
    %c0_14 = arith.constant 0 : index
    %52 = vector.load %arg3[%c0_13, %c0_14] : memref<8x128xf32, #tpu.memory_space<vmem>>, vector<8x128xf32>
    tpu.vector_store %arg3[%c0_13, %c0_14], %51 {strides = array<i32>} : memref<8x128xf32, #tpu.memory_space<vmem>>, vector<8x128xf32>,
    return
  }
  func.func @transform_0(%arg0: i32) -> (i32, i32) {
    %c0_i32 = arith.constant 0 : i32
    %c0_i32_0 = arith.constant 0 : i32
    return %arg0, %c0_i32 : i32, i32
  }
  func.func @transform_1(%arg0: i32) -> (i32, i32) {
    %c0_i32 = arith.constant 0 : i32
    %c0_i32_0 = arith.constant 0 : i32
    %c0_i32_1 = arith.constant 0 : i32
    return %c0_i32, %c0_i32_0 : i32, i32
  }
  func.func @transform_2(%arg0: i32) -> (i32, i32) {
    %c0_i32 = arith.constant 0 : i32
    %c0_i32_0 = arith.constant 0 : i32
    return %arg0, %c0_i32 : i32, i32
  }
}

</mosaic_0001>

<llo_original>
// kernel: tpu_custom_call.1
$region0: #{tpu_custom_call.1}
  #allocation0 [shape = 'u32[]', space=smem, size = 0x4, offset = 0x4, fixed_abs, tag = 'smem constant byte address 0x4 - core index']
  #allocation1 [shape = 'u32[144,128]{1,0:T(1,128)}', space=vmem, size = 0x12000, scoped, tag = 'internal scratch']
  %s0 = inlined_call_operand.hbm [shape: f32[8,128], index: 0, kind: input, shape index: {}]
  %s1 = inlined_call_operand.hbm [shape: f32[3,128], index: 1, kind: input, shape index: {}]
  %s2 = inlined_call_operand.hbm [shape: f32[8,128], index: 2, kind: output, shape index: {}]
  %s3 = sld [smem:[#allocation0]]
  $region26: #{tpu_custom_call.1} parent=0
    _
  %s5 = ssub.s32 1, %s3
  %s6 = scalar_select 0, %s5, %s3
  $region1: #{tpu_custom_call.1} parent=0
    #allocation2 [shape = 'u8[4096]{0}', space=vmem, size = 0x1000, scoped, tag = 'input window, operand 0, single buffered']
    #allocation3 [shape = 's32[1]{0}', space=sflag, size = 0x4, scoped, tag = 'scoped memory for tpu_custom_call.1']
    #allocation4 [shape = 's32[1]{0}', space=sflag, size = 0x4, scoped, tag = 'scoped memory for tpu_custom_call.1']
    #allocation5 [shape = 'u8[2048]{0}', space=vmem, size = 0x800, scoped, tag = 'input window, operand 1, single buffered']
    #allocation6 [shape = 's32[1]{0}', space=sflag, size = 0x4, scoped, tag = 'scoped memory for tpu_custom_call.1']
    #allocation7 [shape = 'u8[4096]{0}', space=vmem, size = 0x1000, scoped, tag = 'output window, operand 0, single buffered']
    %7 = vsyncpa [#allocation3], 0
    %8 = vsyncpa [#allocation6], 0
    %9 = vsyncpa [#allocation4], 0
    // Predicated region
    $region2: #{tpu_custom_call.1} parent=1 // pred_check
      _
    $region3: #{tpu_custom_call.1} parent=1 // pred_check_branch
      %11 = sbr.rel (0) target = $region5
    $region4: #{tpu_custom_call.1} parent=1 // pred_region
      %s13 = ssub.s32 128, 128
      %14 = vsyncadd [#allocation3], %s13
      %s16 = sshll.u32 [#allocation2], 4
      %s17 = int_to_ptr.vmem [resolvable:$true] %s16
      %19 = dma.hbm_to_vmem [thread:$0]  %s0, 128, %s17, [#allocation3]
    $region5: #{tpu_custom_call.1} parent=1 // pred_fallthru
      _
    // Predicated region
    $region6: #{tpu_custom_call.1} parent=1 // pred_check
      _
    $region7: #{tpu_custom_call.1} parent=1 // pred_check_branch
      %21 = sbr.rel (0) target = $region9
    $region8: #{tpu_custom_call.1} parent=1 // pred_region
      %s23 = ssub.s32 64, 64
      %24 = vsyncadd [#allocation6], %s23
      %s26 = sshll.u32 [#allocation5], 4
      %s27 = int_to_ptr.vmem [resolvable:$true] %s26
      %29 = dma.hbm_to_vmem [thread:$0]  %s1, 64, %s27, [#allocation6]
    $region9: #{tpu_custom_call.1} parent=1 // pred_fallthru
      _
    // Predicated region
    $region10: #{tpu_custom_call.1} parent=1 // pred_check
      _
    $region11: #{tpu_custom_call.1} parent=1 // pred_check_branch
      %31 = sbr.rel (0) target = $region13
    $region12: #{tpu_custom_call.1} parent=1 // pred_region
      %32 = dma.done [#allocation3], 128
    $region13: #{tpu_custom_call.1} parent=1 // pred_fallthru
      _
    // Predicated region
    $region14: #{tpu_custom_call.1} parent=1 // pred_check
      _
    $region15: #{tpu_custom_call.1} parent=1 // pred_check_branch
      %34 = sbr.rel (0) target = $region17
    $region16: #{tpu_custom_call.1} parent=1 // pred_region
      %35 = dma.done [#allocation6], 64
    $region17: #{tpu_custom_call.1} parent=1 // pred_fallthru
      _
    %v36 = vld [vmem:[#allocation2] sm:$0xff]
    %v37 = vld [vmem:[#allocation5] sm:$0x1]
    %v38 = vlaneseq
    %v39 = vshrl.u32 %v38, 7
    %v40 = vsub.s32 0, %v39
    %v41 = vrot.slane %v37, %v40
    %v42 = vmul.f32 %v36, %v41
    %43 = vadd.xlane.f32.xlu0 %v42
    %v44 = vpop.xlane.xlu0 %43
    %v45 = vmul.f32 %v41, %v44
    %v46 = vsub.f32 %v36, %v45
    %v47 = vmul.f32 %v46, %v46
    %48 = vadd.xlane.f32.xlu0 %v47
    %v49 = vpop.xlane.xlu0 %48
    %v50 = vmax.f32 %v49, 1e-24
    %v51 = vrsqrt.pop %v50
    %v52 = vmul.f32 %v46, %v51
    %v53 = vld [vmem:[#allocation5 + $0x1] sm:$0x1]
    %v54 = vlaneseq
    %v55 = vshrl.u32 %v54, 7
    %v56 = vsub.s32 0, %v55
    %v57 = vrot.slane %v53, %v56
    %v58 = vmul.f32 %v52, %v57
    %59 = vadd.xlane.f32.xlu0 %v58
    %v60 = vpop.xlane.xlu0 %59
    %v61 = vmul.f32 %v57, %v60
    %v62 = vsub.f32 %v52, %v61
    %v63 = vmul.f32 %v62, %v62
    %64 = vadd.xlane.f32.xlu0 %v63
    %v65 = vpop.xlane.xlu0 %64
    %v66 = vmax.f32 %v65, 1e-24
    %v67 = vrsqrt.pop %v66
    %v68 = vmul.f32 %v62, %v67
    %v69 = vld [vmem:[#allocation5 + $0x2] sm:$0x1]
    %v70 = vlaneseq
    %v71 = vshrl.u32 %v70, 7
    %v72 = vsub.s32 0, %v71
    %v73 = vrot.slane %v69, %v72
    %v74 = vmul.f32 %v68, %v73
    %75 = vadd.xlane.f32.xlu0 %v74
    %v76 = vpop.xlane.xlu0 %75
    %v77 = vmul.f32 %v73, %v76
    %v78 = vsub.f32 %v68, %v77
    %v79 = vmul.f32 %v78, %v78
    %80 = vadd.xlane.f32.xlu0 %v79
    %v81 = vpop.xlane.xlu0 %80
    %v82 = vmax.f32 %v81, 1e-24
    %v83 = vrsqrt.pop %v82
    %v84 = vmul.f32 %v78, %v83
    %85 = vst [vmem:[#allocation7] sm:$0xff] %v84
    // Predicated region
    $region18: #{tpu_custom_call.1} parent=1 // pred_check
      _
    $region19: #{tpu_custom_call.1} parent=1 // pred_check_branch
      %87 = sbr.rel (0) target = $region21
    $region20: #{tpu_custom_call.1} parent=1 // pred_region
      %s89 = ssub.s32 128, 128
      %90 = vsyncadd [#allocation4], %s89
      %s92 = sshll.u32 [#allocation7], 4
      %s93 = int_to_ptr.vmem [resolvable:$true] %s92
      %95 = dma.vmem_to_hbm [thread:$0]  %s93, 128, %s2, [#allocation4]
    $region21: #{tpu_custom_call.1} parent=1 // pred_fallthru
      _
    // Predicated region
    $region22: #{tpu_custom_call.1} parent=1 // pred_check
      _
    $region23: #{tpu_custom_call.1} parent=1 // pred_check_branch
      %97 = sbr.rel (0) target = $region25
    $region24: #{tpu_custom_call.1} parent=1 // pred_region
      %98 = dma.done [#allocation4], 128
    $region25: #{tpu_custom_call.1} parent=1 // pred_fallthru
      _
    %99 = vsyncpa [#allocation3], 1
    %100 = vsyncpa [#allocation6], 1
    %101 = vsyncpa [#allocation4], 1

</llo_original>
